<compile_context>
chip_gen: v5e
topology: v5e:2x2
jax: 0.10.0
libtpu: 0.0.40
codegen_flags: <defaults>
</compile_context>

<pallas_src>
import jax
import jax.numpy as jnp
from jax.experimental import pallas as pl
from jax.experimental.pallas import tpu as pltpu


def _round_up(x, m):
    return ((x + m - 1) // m) * m


def _head_kernel(x_ref, w1_ref, b1_ref, w2_ref, b2_ref, hid_ref, out_ref):
    # dropout (p=0.1) is identity in inference mode.
    x = x_ref[...]                                             # bf16 [TB, Hp]
    # dense: x @ W1 (bf16 MXU, f32 accumulate), f32 bias add, EUP tanh.
    h = jnp.dot(x, w1_ref[...], preferred_element_type=jnp.float32)
    h = jnp.tanh(h + b1_ref[...])                              # f32 [TB, Hp]
    hid_ref[...] = h.astype(hid_ref.dtype)
    # out_proj: lane-padded to 128 output columns -> unmasked lane-dense store.
    logits = jnp.dot(h.astype(w2_ref.dtype), w2_ref[...],
                     preferred_element_type=jnp.float32)       # f32 [TB, Lp]
    out_ref[...] = (logits + b2_ref[...]).astype(out_ref.dtype)


def roberta_classification_head(features, w_dense, b_dense, w_out, b_out,
                                *, tb_max=256):
    """features: [B, H] f32.  w_dense: [H, H] ((in, out) layout).  b_dense: [H].
    w_out: [H, L] ((in, out) layout).  b_out: [L].
    Returns (last_hidden [B, H] f32, logits [B, L] f32)."""
    B, H = features.shape
    L = w_out.shape[1]

    # ---- padding for dense lane/sublane layout -----------------------------
    Hp = _round_up(H, 128)                       # lane-dense hidden dim
    Lp = _round_up(L, 128)                       # lane-dense logits (no vst.msk)
    TB = _round_up(min(tb_max, _round_up(B, 16)), 16)   # bf16 needs >=16 rows
    Bp = _round_up(B, TB)

    # Heavy operands -> bf16 (zero padded); biases stay f32.
    xp = jnp.zeros((Bp, Hp), jnp.bfloat16).at[:B, :H].set(
        features.astype(jnp.bfloat16))
    w1p = jnp.zeros((Hp, Hp), jnp.bfloat16).at[:H, :H].set(
        w_dense.astype(jnp.bfloat16))
    b1p = jnp.zeros((1, Hp), jnp.float32).at[0, :H].set(
        b_dense.astype(jnp.float32))
    w2p = jnp.zeros((Hp, Lp), jnp.bfloat16).at[:H, :L].set(
        w_out.astype(jnp.bfloat16))
    b2p = jnp.zeros((1, Lp), jnp.float32).at[0, :L].set(
        b_out.astype(jnp.float32))

    out_shapes = (
        jax.ShapeDtypeStruct((Bp, Hp), jnp.float32),   # last_hidden (padded)
        jax.ShapeDtypeStruct((Bp, Lp), jnp.float32),   # logits (lane padded)
    )

    # Advisory cost hint so XLA schedules neighbors around the custom call.
    cost = pl.CostEstimate(
        flops=2 * Bp * Hp * (Hp + Lp),
        transcendentals=Bp * Hp,
        bytes_accessed=(xp.size * 2 + w1p.size * 2 + w2p.size * 2
                        + b1p.size * 4 + b2p.size * 4
                        + Bp * Hp * 4 + Bp * Lp * 4),
    )

    nb = Bp // TB
    if nb == 1:
        # Single tile: no grid, no pipeline, no double buffering — everything
        # is DMA'd into VMEM once and the kernel runs one shot.
        hid_p, log_p = pl.pallas_call(
            _head_kernel,
            out_shape=out_shapes,
            in_specs=[pl.BlockSpec(memory_space=pltpu.MemorySpace.VMEM)] * 5,
            out_specs=(pl.BlockSpec(memory_space=pltpu.MemorySpace.VMEM),
                       pl.BlockSpec(memory_space=pltpu.MemorySpace.VMEM)),
            cost_estimate=cost,
        )(xp, w1p, b1p, w2p, b2p)
    else:
        # Batch-tiled: W1/W2/biases stay VMEM-resident across the grid
        # (index_map -> (0, 0)); the batch axis is "parallel" so v7x's two
        # TensorCores each take half the row tiles.
        hid_p, log_p = pl.pallas_call(
            _head_kernel,
            out_shape=out_shapes,
            grid_spec=pltpu.PrefetchScalarGridSpec(
                num_scalar_prefetch=0,
                grid=(nb,),
                in_specs=[
                    pl.BlockSpec((TB, Hp), lambda i: (i, 0)),
                    pl.BlockSpec((Hp, Hp), lambda i: (0, 0)),
                    pl.BlockSpec((1, Hp), lambda i: (0, 0)),
                    pl.BlockSpec((Hp, Lp), lambda i: (0, 0)),
                    pl.BlockSpec((1, Lp), lambda i: (0, 0)),
                ],
                out_specs=[
                    pl.BlockSpec((TB, Hp), lambda i: (i, 0)),
                    pl.BlockSpec((TB, Lp), lambda i: (i, 0)),
                ],
            ),
            compiler_params=pltpu.CompilerParams(
                dimension_semantics=("parallel",)),
            cost_estimate=cost,
        )(xp, w1p, b1p, w2p, b2p)

    # Strip padding outside the kernel.
    return hid_p[:B, :H], log_p[:B, :L]


if __name__ == "__main__":
    # Small, TPU-friendly shapes consistent with the module:
    # bert_hidden_dim -> 128 (instead of 1024), feature rows -> 8, labels -> 4.
    B, H, L = 8, 128, 4
    key = jax.random.PRNGKey(0)
    k1, k2, k3, k4, k5, k6 = jax.random.split(key, 6)

    features = jax.random.normal(k1, (B, H), dtype=jnp.float32)
    # Synthetic parameters stored directly as (in, out) for the kernel
    # (PyTorch nn.Linear stores (out, in); transpose happens at load time).
    w_dense = jax.random.normal(k2, (H, H), dtype=jnp.float32) * 0.02
    b_dense = jax.random.normal(k3, (H,), dtype=jnp.float32) * 0.02
    w_out = jax.random.normal(k4, (H, L), dtype=jnp.float32) * 0.02
    b_out = jax.random.normal(k5, (L,), dtype=jnp.float32) * 0.02

    # f32 reference (bf16 kernel inputs => loosened tolerance, ~1e-2).
    ref_hidden = jnp.tanh(features @ w_dense + b_dense)
    ref_logits = ref_hidden @ w_out + b_out

    # Path 1: single-tile, no-grid VMEM-resident kernel (the demo shape).
    last_hidden, logits = roberta_classification_head(
        features, w_dense, b_dense, w_out, b_out)
    jax.block_until_ready((last_hidden, logits))
    assert last_hidden.shape == (B, H) and logits.shape == (B, L)
    assert jnp.allclose(last_hidden, ref_hidden, atol=1e-2, rtol=1e-2)
    assert jnp.allclose(logits, ref_logits, atol=1e-2, rtol=1e-2)

    # Path 2: batch-tiled grid with resident weights (exercised at a still
    # small shape by capping the row tile at 16 -> 3 grid steps).
    B2 = 48
    features2 = jax.random.normal(k6, (B2, H), dtype=jnp.float32)
    ref_hidden2 = jnp.tanh(features2 @ w_dense + b_dense)
    ref_logits2 = ref_hidden2 @ w_out + b_out

    last_hidden2, logits2 = roberta_classification_head(
        features2, w_dense, b_dense, w_out, b_out, tb_max=16)
    jax.block_until_ready((last_hidden2, logits2))
    assert last_hidden2.shape == (B2, H) and logits2.shape == (B2, L)
    assert jnp.allclose(last_hidden2, ref_hidden2, atol=1e-2, rtol=1e-2)
    assert jnp.allclose(logits2, ref_logits2, atol=1e-2, rtol=1e-2)

    print("KERNEL_OK")
</pallas_src>

<mosaic_0001>
module attributes {stable_mosaic.version = 11 : i64} {
  func.func @_head_kernel(%arg0: memref<16x128xbf16, #tpu.memory_space<vmem>>, %arg1: memref<128x128xbf16, #tpu.memory_space<vmem>>, %arg2: memref<1x128xf32, #tpu.memory_space<vmem>>, %arg3: memref<128x128xbf16, #tpu.memory_space<vmem>>, %arg4: memref<1x128xf32, #tpu.memory_space<vmem>>, %arg5: memref<16x128xf32, #tpu.memory_space<vmem>>, %arg6: memref<16x128xf32, #tpu.memory_space<vmem>>) attributes {dimension_semantics = [], scalar_prefetch = 0 : i64, scratch_operands = 0 : i64, tpu.core_type = #tpu.core_type<tc>} {
    %c0 = arith.constant 0 : index
    %c0_0 = arith.constant 0 : index
    %0 = vector.load %arg0[%c0, %c0_0] : memref<16x128xbf16, #tpu.memory_space<vmem>>, vector<16x128xbf16>
    %c0_1 = arith.constant 0 : index
    %c0_2 = arith.constant 0 : index
    %1 = vector.load %arg1[%c0_1, %c0_2] : memref<128x128xbf16, #tpu.memory_space<vmem>>, vector<128x128xbf16>
    %cst = arith.constant dense<0.000000e+00> : vector<16x128xf32>
    %2 = tpu.matmul %0, %1, %cst {dimension_numbers = #tpu.dot_dimension_numbers<[1], [0], [0], [1], [0, 0, 1, 1], [], []>} : vector<16x128xbf16>, vector<128x128xbf16>, vector<16x128xf32> -> vector<16x128xf32>
    %c0_3 = arith.constant 0 : index
    %c0_4 = arith.constant 0 : index
    %3 = vector.load %arg2[%c0_3, %c0_4] : memref<1x128xf32, #tpu.memory_space<vmem>>, vector<1x128xf32>
    %4 = vector.broadcast %3 : vector<1x128xf32> to vector<16x128xf32>
    %5 = arith.addf %2, %4 : vector<16x128xf32>
    %6 = math.tanh %5 : vector<16x128xf32>
    %c0_5 = arith.constant 0 : index
    %c0_6 = arith.constant 0 : index
    %7 = vector.load %arg5[%c0_5, %c0_6] : memref<16x128xf32, #tpu.memory_space<vmem>>, vector<16x128xf32>
    tpu.vector_store %arg5[%c0_5, %c0_6], %6 {strides = array<i32>} : memref<16x128xf32, #tpu.memory_space<vmem>>, vector<16x128xf32>,
    %8 = arith.truncf %6 : vector<16x128xf32> to vector<16x128xbf16>
    %c0_7 = arith.constant 0 : index
    %c0_8 = arith.constant 0 : index
    %9 = vector.load %arg3[%c0_7, %c0_8] : memref<128x128xbf16, #tpu.memory_space<vmem>>, vector<128x128xbf16>
    %cst_9 = arith.constant dense<0.000000e+00> : vector<16x128xf32>
    %10 = tpu.matmul %8, %9, %cst_9 {dimension_numbers = #tpu.dot_dimension_numbers<[1], [0], [0], [1], [0, 0, 1, 1], [], []>} : vector<16x128xbf16>, vector<128x128xbf16>, vector<16x128xf32> -> vector<16x128xf32>
    %c0_10 = arith.constant 0 : index
    %c0_11 = arith.constant 0 : index
    %11 = vector.load %arg4[%c0_10, %c0_11] : memref<1x128xf32, #tpu.memory_space<vmem>>, vector<1x128xf32>
    %12 = vector.broadcast %11 : vector<1x128xf32> to vector<16x128xf32>
    %13 = arith.addf %10, %12 : vector<16x128xf32>
    %c0_12 = arith.constant 0 : index
    %c0_13 = arith.constant 0 : index
    %14 = vector.load %arg6[%c0_12, %c0_13] : memref<16x128xf32, #tpu.memory_space<vmem>>, vector<16x128xf32>
    tpu.vector_store %arg6[%c0_12, %c0_13], %13 {strides = array<i32>} : memref<16x128xf32, #tpu.memory_space<vmem>>, vector<16x128xf32>,
    return
  }
}

</mosaic_0001>

<llo_original>
// kernel: tpu_custom_call.1
$region0: #{tpu_custom_call.1}
  #allocation0 [shape = 'u32[]', space=smem, size = 0x4, offset = 0x4, fixed_abs, tag = 'smem constant byte address 0x4 - core index']
  #allocation1 [shape = 'u32[72,128]{1,0:T(1,128)}', space=vmem, size = 0x9000, scoped, tag = 'internal scratch']
  %s0 = inlined_call_operand.hbm [shape: bf16[16,128], index: 0, kind: input, shape index: {}]
  %s1 = inlined_call_operand.hbm [shape: bf16[128,128], index: 1, kind: input, shape index: {}]
  %s2 = inlined_call_operand.vmem [shape: f32[1,128], index: 2, kind: input, shape index: {}]
  %s3 = inlined_call_operand.hbm [shape: bf16[128,128], index: 3, kind: input, shape index: {}]
  %s4 = inlined_call_operand.vmem [shape: f32[1,128], index: 4, kind: input, shape index: {}]
  %s5 = inlined_call_operand.hbm [shape: f32[16,128], index: 5, kind: output, shape index: {0}]
  %s6 = inlined_call_operand.hbm [shape: f32[16,128], index: 6, kind: output, shape index: {1}]
  %7 = xla_tuple %s5, %s6
  %s8 = sld [smem:[#allocation0]]
  $region50: #{tpu_custom_call.1} parent=0
    _
  %s10 = ssub.s32 1, %s8
  %s11 = scalar_select 0, %s10, %s8
  $region1: #{tpu_custom_call.1} parent=0
    #allocation2 [shape = 'u8[4096]{0}', space=vmem, size = 0x1000, scoped, tag = 'input window, operand 0, single buffered']
    #allocation3 [shape = 's32[1]{0}', space=sflag, size = 0x4, scoped, tag = 'scoped memory for tpu_custom_call.1']
    #allocation4 [shape = 's32[1]{0}', space=sflag, size = 0x4, scoped, tag = 'scoped memory for tpu_custom_call.1']
    #allocation5 [shape = 'u8[32768]{0}', space=vmem, size = 0x8000, scoped, tag = 'input window, operand 1, single buffered']
    #allocation6 [shape = 's32[1]{0}', space=sflag, size = 0x4, scoped, tag = 'scoped memory for tpu_custom_call.1']
    #allocation7 [shape = 'u8[32768]{0}', space=vmem, size = 0x8000, scoped, tag = 'input window, operand 3, single buffered']
    #allocation8 [shape = 'u8[8192]{0}', space=vmem, size = 0x2000, scoped, tag = 'output window, operand 0, single buffered']
    #allocation9 [shape = 'u8[8192]{0}', space=vmem, size = 0x2000, scoped, tag = 'output window, operand 1, single buffered']
    #allocation10 [shape = 's32[1]{0}', space=sflag, size = 0x4, scoped, tag = 'scoped memory for tpu_custom_call.1']
    %12 = vsyncpa [#allocation3], 0
    %13 = vsyncpa [#allocation6], 0
    %14 = vsyncpa [#allocation4], 0
    %15 = vsyncpa [#allocation10], 0
    // Predicated region
    $region2: #{tpu_custom_call.1} parent=1 // pred_check
      _
    $region3: #{tpu_custom_call.1} parent=1 // pred_check_branch
      %17 = sbr.rel (0) target = $region5
    $region4: #{tpu_custom_call.1} parent=1 // pred_region
      %19 = vsyncadd [#allocation3], 0
      %s20 = sshll.u32 %s0, 4
      %s21 = int_to_ptr.hbm [resolvable:$true] %s20
      %s22 = sshll.u32 [#allocation2], 4
      %s23 = int_to_ptr.vmem [resolvable:$true] %s22
      %28 = dma.hbm_to_vmem [thread:$0]  %s21, 128, %s23, [#allocation3], 64, 64, 4
    $region5: #{tpu_custom_call.1} parent=1 // pred_fallthru
      _
    // Predicated region
    $region6: #{tpu_custom_call.1} parent=1 // pred_check
      _
    $region7: #{tpu_custom_call.1} parent=1 // pred_check_branch
      %30 = sbr.rel (0) target = $region9
    $region8: #{tpu_custom_call.1} parent=1 // pred_region
      %32 = vsyncadd [#allocation6], 0
      %s33 = sshll.u32 %s1, 4
      %s34 = int_to_ptr.hbm [resolvable:$true] %s33
      %s35 = sshll.u32 [#allocation5], 4
      %s36 = int_to_ptr.vmem [resolvable:$true] %s35
      %41 = dma.hbm_to_vmem [thread:$0]  %s34, 1024, %s36, [#allocation6], 64, 64, 4
    $region9: #{tpu_custom_call.1} parent=1 // pred_fallthru
      _
    // Predicated region
    $region10: #{tpu_custom_call.1} parent=1 // pred_check
      _
    $region11: #{tpu_custom_call.1} parent=1 // pred_check_branch
      %43 = sbr.rel (0) target = $region13
    $region12: #{tpu_custom_call.1} parent=1 // pred_region
      _
    $region13: #{tpu_custom_call.1} parent=1 // pred_fallthru
      _
    // Predicated region
    $region14: #{tpu_custom_call.1} parent=1 // pred_check
      _
    $region15: #{tpu_custom_call.1} parent=1 // pred_check_branch
      %45 = sbr.rel (0) target = $region17
    $region16: #{tpu_custom_call.1} parent=1 // pred_region
      %47 = vsyncadd [#allocation6], 0
      %s48 = sshll.u32 %s3, 4
      %s49 = int_to_ptr.hbm [resolvable:$true] %s48
      %s50 = sshll.u32 [#allocation7], 4
      %s51 = int_to_ptr.vmem [resolvable:$true] %s50
      %56 = dma.hbm_to_vmem [thread:$0]  %s49, 1024, %s51, [#allocation6], 64, 64, 4
    $region17: #{tpu_custom_call.1} parent=1 // pred_fallthru
      _
    // Predicated region
    $region18: #{tpu_custom_call.1} parent=1 // pred_check
      _
    $region19: #{tpu_custom_call.1} parent=1 // pred_check_branch
      %58 = sbr.rel (0) target = $region21
    $region20: #{tpu_custom_call.1} parent=1 // pred_region
      _
    $region21: #{tpu_custom_call.1} parent=1 // pred_fallthru
      _
    // Predicated region
    $region22: #{tpu_custom_call.1} parent=1 // pred_check
      _
    $region23: #{tpu_custom_call.1} parent=1 // pred_check_branch
      %60 = sbr.rel (0) target = $region25
    $region24: #{tpu_custom_call.1} parent=1 // pred_region
      %62 = dma.done [#allocation3], 128
    $region25: #{tpu_custom_call.1} parent=1 // pred_fallthru
      _
    // Predicated region
    $region26: #{tpu_custom_call.1} parent=1 // pred_check
      _
    $region27: #{tpu_custom_call.1} parent=1 // pred_check_branch
      %64 = sbr.rel (0) target = $region29
    $region28: #{tpu_custom_call.1} parent=1 // pred_region
      %66 = dma.done [#allocation6], 1024
    $region29: #{tpu_custom_call.1} parent=1 // pred_fallthru
      _
    // Predicated region
    $region30: #{tpu_custom_call.1} parent=1 // pred_check
      _
    $region31: #{tpu_custom_call.1} parent=1 // pred_check_branch
      %68 = sbr.rel (0) target = $region33
    $region32: #{tpu_custom_call.1} parent=1 // pred_region
      %70 = dma.done [#allocation6], 1024
    $region33: #{tpu_custom_call.1} parent=1 // pred_fallthru
      _
    %v71 = vld [vmem:[#allocation2] sm:$0xf]
    %v72 = vld [vmem:[#allocation2 + $0x4] sm:$0xf]
    %v73 = vld [vmem:[#allocation5] sm:$0xf]
    %v74 = vld [vmem:[#allocation5 + $0x4] sm:$0xf]
    %v75 = vld [vmem:[#allocation5 + $0x8] sm:$0xf]
    %v76 = vld [vmem:[#allocation5 + $0xc] sm:$0xf]
    %v77 = vld [vmem:[#allocation5 + $0x10] sm:$0xf]
    %v78 = vld [vmem:[#allocation5 + $0x14] sm:$0xf]
    %v79 = vld [vmem:[#allocation5 + $0x18] sm:$0xf]
    %v80 = vld [vmem:[#allocation5 + $0x1c] sm:$0xf]
    %v81 = vld [vmem:[#allocation5 + $0x20] sm:$0xf]
    %v82 = vld [vmem:[#allocation5 + $0x24] sm:$0xf]
    %v83 = vld [vmem:[#allocation5 + $0x28] sm:$0xf]
    %v84 = vld [vmem:[#allocation5 + $0x2c] sm:$0xf]
    %v85 = vld [vmem:[#allocation5 + $0x30] sm:$0xf]
    %v86 = vld [vmem:[#allocation5 + $0x34] sm:$0xf]
    %v87 = vld [vmem:[#allocation5 + $0x38] sm:$0xf]
    %v88 = vld [vmem:[#allocation5 + $0x3c] sm:$0xf]
    %v89 = vld [vmem:[%s2] sm:$0x1]
    %v91 = vperm.slane %v89, 0
    %v95 = vunpack.c.l.b16 %v71
    %v96 = vunpack.c.l.b16 %v72
    %v97 = vpack.c.b16 %v96, %v95
    %v115 = vunpack.c.l.b16 %v73
    %v116 = vunpack.c.l.b16 %v74
    %v117 = vunpack.c.l.b16 %v75
    %v118 = vunpack.c.l.b16 %v76
    %v119 = vunpack.c.l.b16 %v77
    %v120 = vunpack.c.l.b16 %v78
    %v121 = vunpack.c.l.b16 %v79
    %v122 = vunpack.c.l.b16 %v80
    %v123 = vunpack.c.l.b16 %v81
    %v124 = vunpack.c.l.b16 %v82
    %v125 = vunpack.c.l.b16 %v83
    %v126 = vunpack.c.l.b16 %v84
    %v127 = vunpack.c.l.b16 %v85
    %v128 = vunpack.c.l.b16 %v86
    %v129 = vunpack.c.l.b16 %v87
    %v130 = vunpack.c.l.b16 %v88
    %v131 = vpack.c.b16 %v116, %v115
    %v132 = vpack.c.b16 %v118, %v117
    %v133 = vpack.c.b16 %v120, %v119
    %v134 = vpack.c.b16 %v122, %v121
    %v135 = vpack.c.b16 %v124, %v123
    %v136 = vpack.c.b16 %v126, %v125
    %v137 = vpack.c.b16 %v128, %v127
    %v138 = vpack.c.b16 %v130, %v129
    %147 = vmatpush.bf16.msra.mxu0 %v138
    %148 = vmatpush.bf16.msra.mxu0 %v137
    %149 = vmatpush.bf16.msra.mxu0 %v136
    %150 = vmatpush.bf16.msra.mxu0 %v135
    %151 = vmatpush.bf16.msra.mxu0 %v134
    %152 = vmatpush.bf16.msra.mxu0 %v133
    %153 = vmatpush.bf16.msra.mxu0 %v132
    %154 = vmatpush.bf16.msra.mxu0 %v131
    %155 = vmatmul.bf16.gmra.mxu0 %v97
    %v156 = vpop.f32.mrf.mxu0
    %v157 = vadd.f32 %v91, %v156
    %v158 = vpop.f32.mrf.mxu0
    %v159 = vadd.f32 %v91, %v158
    %160 = vdwg.mxu0
    %v161 = vtanh.pop %v157
    %v162 = vtanh.pop %v159
    %163 = vst [vmem:[#allocation8] sm:$0xff] %v161
    %164 = vst [vmem:[#allocation8 + $0x8] sm:$0xff] %v162
    %v165 = vpack.c.bf16 %v162, %v161
    %v166 = vld [vmem:[#allocation7] sm:$0xf]
    %v167 = vld [vmem:[#allocation7 + $0x4] sm:$0xf]
    %v168 = vld [vmem:[#allocation7 + $0x8] sm:$0xf]
    %v169 = vld [vmem:[#allocation7 + $0xc] sm:$0xf]
    %v170 = vld [vmem:[#allocation7 + $0x10] sm:$0xf]
    %v171 = vld [vmem:[#allocation7 + $0x14] sm:$0xf]
    %v172 = vld [vmem:[#allocation7 + $0x18] sm:$0xf]
    %v173 = vld [vmem:[#allocation7 + $0x1c] sm:$0xf]
    %v174 = vld [vmem:[#allocation7 + $0x20] sm:$0xf]
    %v175 = vld [vmem:[#allocation7 + $0x24] sm:$0xf]
    %v176 = vld [vmem:[#allocation7 + $0x28] sm:$0xf]
    %v177 = vld [vmem:[#allocation7 + $0x2c] sm:$0xf]
    %v178 = vld [vmem:[#allocation7 + $0x30] sm:$0xf]
    %v179 = vld [vmem:[#allocation7 + $0x34] sm:$0xf]
    %v180 = vld [vmem:[#allocation7 + $0x38] sm:$0xf]
    %v181 = vld [vmem:[#allocation7 + $0x3c] sm:$0xf]
    %v182 = vld [vmem:[%s4] sm:$0x1]
    %v184 = vperm.slane %v182, 0
    %v202 = vunpack.c.l.b16 %v166
    %v203 = vunpack.c.l.b16 %v167
    %v204 = vunpack.c.l.b16 %v168
    %v205 = vunpack.c.l.b16 %v169
    %v206 = vunpack.c.l.b16 %v170
    %v207 = vunpack.c.l.b16 %v171
    %v208 = vunpack.c.l.b16 %v172
    %v209 = vunpack.c.l.b16 %v173
    %v210 = vunpack.c.l.b16 %v174
    %v211 = vunpack.c.l.b16 %v175
    %v212 = vunpack.c.l.b16 %v176
    %v213 = vunpack.c.l.b16 %v177
    %v214 = vunpack.c.l.b16 %v178
    %v215 = vunpack.c.l.b16 %v179
    %v216 = vunpack.c.l.b16 %v180
    %v217 = vunpack.c.l.b16 %v181
    %v218 = vpack.c.b16 %v203, %v202
    %v219 = vpack.c.b16 %v205, %v204
    %v220 = vpack.c.b16 %v207, %v206
    %v221 = vpack.c.b16 %v209, %v208
    %v222 = vpack.c.b16 %v211, %v210
    %v223 = vpack.c.b16 %v213, %v212
    %v224 = vpack.c.b16 %v215, %v214
    %v225 = vpack.c.b16 %v217, %v216
    %234 = vmatpush.bf16.msra.mxu0 %v225
    %235 = vmatpush.bf16.msra.mxu0 %v224
    %236 = vmatpush.bf16.msra.mxu0 %v223
    %237 = vmatpush.bf16.msra.mxu0 %v222
    %238 = vmatpush.bf16.msra.mxu0 %v221
    %239 = vmatpush.bf16.msra.mxu0 %v220
    %240 = vmatpush.bf16.msra.mxu0 %v219
    %241 = vmatpush.bf16.msra.mxu0 %v218
    %242 = vmatmul.bf16.gmra.mxu0 %v165
    %v243 = vpop.f32.mrf.mxu0
    %v244 = vadd.f32 %v184, %v243
    %v245 = vpop.f32.mrf.mxu0
    %v246 = vadd.f32 %v184, %v245
    %247 = vdwg.mxu0
    %248 = vst [vmem:[#allocation9] sm:$0xff] %v244
    %249 = vst [vmem:[#allocation9 + $0x8] sm:$0xff] %v246
    // Predicated region
    $region34: #{tpu_custom_call.1} parent=1 // pred_check
      _
    $region35: #{tpu_custom_call.1} parent=1 // pred_check_branch
      %251 = sbr.rel (0) target = $region37
    $region36: #{tpu_custom_call.1} parent=1 // pred_region
      %253 = vsyncadd [#allocation4], 0
      %s254 = sshll.u32 [#allocation8], 4
      %s255 = int_to_ptr.vmem [resolvable:$true] %s254
      %s256 = sshll.u32 %s5, 4
      %s257 = int_to_ptr.hbm [resolvable:$true] %s256
      %262 = dma.vmem_to_hbm [thread:$0]  %s255, 256, %s257, [#allocation4], 128, 128, 8
    $region37: #{tpu_custom_call.1} parent=1 // pred_fallthru
      _
    // Predicated region
    $region38: #{tpu_custom_call.1} parent=1 // pred_check
      _
    $region39: #{tpu_custom_call.1} parent=1 // pred_check_branch
      %264 = sbr.rel (0) target = $region41
    $region40: #{tpu_custom_call.1} parent=1 // pred_region
      %266 = vsyncadd [#allocation10], 0
      %s267 = sshll.u32 [#allocation9], 4
      %s268 = int_to_ptr.vmem [resolvable:$true] %s267
      %s269 = sshll.u32 %s6, 4
      %s270 = int_to_ptr.hbm [resolvable:$true] %s269
      %275 = dma.vmem_to_hbm [thread:$0]  %s268, 256, %s270, [#allocation10], 128, 128, 8
    $region41: #{tpu_custom_call.1} parent=1 // pred_fallthru
      _
    // Predicated region
    $region42: #{tpu_custom_call.1} parent=1 // pred_check
      _
    $region43: #{tpu_custom_call.1} parent=1 // pred_check_branch
      %277 = sbr.rel (0) target = $region45
    $region44: #{tpu_custom_call.1} parent=1 // pred_region
      %279 = dma.done [#allocation4], 256
    $region45: #{tpu_custom_call.1} parent=1 // pred_fallthru
      _
    // Predicated region
    $region46: #{tpu_custom_call.1} parent=1 // pred_check
      _
    $region47: #{tpu_custom_call.1} parent=1 // pred_check_branch
      %281 = sbr.rel (0) target = $region49
    $region48: #{tpu_custom_call.1} parent=1 // pred_region
      %283 = dma.done [#allocation10], 256
    $region49: #{tpu_custom_call.1} parent=1 // pred_fallthru
      _
    %284 = vsyncpa [#allocation3], 1
    %285 = vsyncpa [#allocation6], 1
    %286 = vsyncpa [#allocation4], 1
    %287 = vsyncpa [#allocation10], 1

</llo_original>
